<compile_context>
chip_gen: v5e
topology: v5e:2x2
jax: 0.10.0
libtpu: 0.0.40
codegen_flags: <defaults>
</compile_context>

<pallas_src>
import functools

import jax
import jax.numpy as jnp
from jax.experimental import pallas as pl
from jax.experimental.pallas import tpu as pltpu


def _actor_kernel(state_ref, w1_ref, b1_ref, w2_ref, b2_ref, w3_ref, b3_ref,
                  out_ref, *, action_bound):
    # fc1 + relu  (bf16 operands, f32 accumulation on the MXU)
    x = state_ref[...].astype(jnp.bfloat16)                       # (TB, S)
    h1 = jnp.dot(x, w1_ref[...], preferred_element_type=jnp.float32) + b1_ref[...]
    h1 = jnp.maximum(h1, 0.0)                                     # (TB, 256) f32

    # fc2 + relu
    h2 = jnp.dot(h1.astype(jnp.bfloat16), w2_ref[...],
                 preferred_element_type=jnp.float32) + b2_ref[...]
    h2 = jnp.maximum(h2, 0.0)                                     # (TB, 128) f32

    # fc3 + tanh * action_bound  (elementwise kept in f32 — free on all gens)
    h3 = jnp.dot(h2.astype(jnp.bfloat16), w3_ref[...],
                 preferred_element_type=jnp.float32) + b3_ref[...]
    out_ref[...] = jnp.tanh(h3) * action_bound                    # (TB, A) f32


def _choose_batch_tiling(batch, *, max_batch_tile=2048, min_batch_tile=16):
    """Balanced, pad-efficient batch tiles; even grid (>=2) for v7x when possible.

    Returns (tile_rows, num_tiles, padded_batch) with:
      * tile_rows a multiple of 16 (bf16 sublane pack) and <= max_batch_tile-ish,
      * padding bounded by < 16 rows per tile (balanced tiles, not cap-and-pad),
      * num_tiles even and >= 2 whenever batch supports two >=16-row tiles, so
        the "parallel" grid axis uses both TensorCores on v7x.
    """
    num_tiles = pl.cdiv(batch, max_batch_tile)
    if batch >= 2 * min_batch_tile:
        num_tiles = max(num_tiles, 2)
        if num_tiles % 2:
            num_tiles += 1
    tile_rows = pl.cdiv(batch, num_tiles)
    tile_rows = max(min_batch_tile, pl.cdiv(tile_rows, 16) * 16)
    padded_batch = num_tiles * tile_rows
    return tile_rows, num_tiles, padded_batch


def actor_forward(state, params, action_bound, *, max_batch_tile=2048):
    """Fused Actor forward pass: batch-tiled grid, weights VMEM-resident."""
    w1, b1, w2, b2, w3, b3 = params
    batch, state_dim = state.shape
    h1_dim = w1.shape[1]
    h2_dim = w2.shape[1]
    action_dim = w3.shape[1]

    tb, num_tiles, padded_batch = _choose_batch_tiling(
        batch, max_batch_tile=max_batch_tile)
    if padded_batch != batch:
        state = jnp.pad(state, ((0, padded_batch - batch), (0, 0)))
    grid = (num_tiles,)

    # Weights / biases: constant index_map -> fetched once, VMEM-resident.
    def const_spec(shape):
        return pl.BlockSpec(shape, lambda i: (0, 0))

    in_specs = [
        pl.BlockSpec((tb, state_dim), lambda i: (i, 0)),     # state: pipelined
        const_spec((state_dim, h1_dim)),                     # w1
        const_spec((1, h1_dim)),                             # b1
        const_spec((h1_dim, h2_dim)),                        # w2
        const_spec((1, h2_dim)),                             # b2
        const_spec((h2_dim, action_dim)),                    # w3
        const_spec((1, action_dim)),                         # b3
    ]
    out_spec = pl.BlockSpec((tb, action_dim), lambda i: (i, 0))

    flops = 2 * padded_batch * (state_dim * h1_dim + h1_dim * h2_dim
                                + h2_dim * action_dim)
    bytes_accessed = (
        state.size * state.dtype.itemsize
        + sum(int(a.size) * a.dtype.itemsize for a in (w1, b1, w2, b2, w3, b3))
        + padded_batch * action_dim * 4
    )
    cost = pl.CostEstimate(flops=flops,
                           transcendentals=padded_batch * action_dim,
                           bytes_accessed=bytes_accessed)

    kernel = functools.partial(_actor_kernel, action_bound=float(action_bound))
    out = pl.pallas_call(
        kernel,
        out_shape=jax.ShapeDtypeStruct((padded_batch, action_dim), jnp.float32),
        grid=grid,
        in_specs=in_specs,
        out_specs=out_spec,
        compiler_params=pltpu.CompilerParams(
            dimension_semantics=("parallel",)),   # shards tiles across TCs on v7x
        cost_estimate=cost,
    )(state, w1, b1, w2, b2, w3, b3)

    return out[:batch]


def init_actor_params(key, state_dim, action_dim):
    """Deterministic synthetic parameters (same shapes as the PyTorch module).

    Weights are stored in bf16 (MXU operand dtype); biases stay f32.
    """
    ks = jax.random.split(key, 6)
    # Stored as (in_features, out_features) for direct x @ W in the kernel.
    w1 = (jax.random.normal(ks[0], (state_dim, 256), jnp.float32) * 0.05
          ).astype(jnp.bfloat16)
    b1 = jax.random.normal(ks[1], (1, 256), jnp.float32) * 0.01
    w2 = (jax.random.normal(ks[2], (256, 128), jnp.float32) * 0.05
          ).astype(jnp.bfloat16)
    b2 = jax.random.normal(ks[3], (1, 128), jnp.float32) * 0.01
    w3 = (jax.random.normal(ks[4], (128, action_dim), jnp.float32) * 0.05
          ).astype(jnp.bfloat16)
    b3 = jax.random.normal(ks[5], (1, action_dim), jnp.float32) * 0.01
    return (w1, b1, w2, b2, w3, b3)


def actor_reference(state, params, action_bound):
    """Plain-JAX reference with matching (bf16 operand, f32 accum) semantics."""
    w1, b1, w2, b2, w3, b3 = params
    x = state.astype(jnp.bfloat16)
    h1 = jnp.maximum(
        jnp.dot(x, w1, preferred_element_type=jnp.float32) + b1, 0.0)
    h2 = jnp.maximum(
        jnp.dot(h1.astype(jnp.bfloat16), w2,
                preferred_element_type=jnp.float32) + b2, 0.0)
    h3 = jnp.dot(h2.astype(jnp.bfloat16), w3,
                 preferred_element_type=jnp.float32) + b3
    return jnp.tanh(h3) * action_bound


if __name__ == "__main__":
    key = jax.random.PRNGKey(0)
    k_state, k_params = jax.random.split(key)

    batch = 8
    state_dim = 16
    action_dim = 4
    action_bound = 2.0

    state = jax.random.normal(k_state, (batch, state_dim), jnp.float32)
    params = init_actor_params(k_params, state_dim, action_dim)

    out = jax.block_until_ready(actor_forward(state, params, action_bound))
    ref = actor_reference(state, params, action_bound)
    assert out.shape == (batch, action_dim)
    # bf16 matmul operands -> loosened tolerance vs. a pure-f32 check.
    assert jnp.allclose(out, ref, atol=2e-2, rtol=2e-2), "mismatch vs reference"

    # Also exercise the multi-tile / padded path (grid=(2,) — the even split
    # that feeds both TensorCores on v7x) with a batch that needs padding.
    batch2 = 50
    state2 = jax.random.normal(jax.random.PRNGKey(1), (batch2, state_dim),
                               jnp.float32)
    out2 = jax.block_until_ready(actor_forward(state2, params, action_bound))
    ref2 = actor_reference(state2, params, action_bound)
    assert out2.shape == (batch2, action_dim)
    assert jnp.allclose(out2, ref2, atol=2e-2, rtol=2e-2), "mismatch (tiled path)"

    print("KERNEL_OK")
</pallas_src>

<mosaic_0001>
module attributes {stable_mosaic.version = 11 : i64} {
  func.func @_actor_kernel(%arg0: i32, %arg1: memref<16x16xf32, #tpu.memory_space<vmem>>, %arg2: memref<16x256xbf16, #tpu.memory_space<vmem>>, %arg3: memref<1x256xf32, #tpu.memory_space<vmem>>, %arg4: memref<256x128xbf16, #tpu.memory_space<vmem>>, %arg5: memref<1x128xf32, #tpu.memory_space<vmem>>, %arg6: memref<128x4xbf16, #tpu.memory_space<vmem>>, %arg7: memref<1x4xf32, #tpu.memory_space<vmem>>, %arg8: memref<16x4xf32, #tpu.memory_space<vmem>>) attributes {dimension_semantics = [#tpu.dimension_semantics<parallel>], iteration_bounds = array<i64: 1>, scalar_prefetch = 0 : i64, scratch_operands = 0 : i64, tpu.core_type = #tpu.core_type<tc>, window_params = [{transform_indices = @transform_0, window_bounds = array<i64: 16, 16>}, {pipeline_mode = #tpu.pipeline_mode<synchronous>, transform_indices = @transform_1, window_bounds = array<i64: 16, 256>}, {pipeline_mode = #tpu.pipeline_mode<synchronous>, transform_indices = @transform_2, window_bounds = array<i64: 1, 256>}, {pipeline_mode = #tpu.pipeline_mode<synchronous>, transform_indices = @transform_3, window_bounds = array<i64: 256, 128>}, {pipeline_mode = #tpu.pipeline_mode<synchronous>, transform_indices = @transform_4, window_bounds = array<i64: 1, 128>}, {pipeline_mode = #tpu.pipeline_mode<synchronous>, transform_indices = @transform_5, window_bounds = array<i64: 128, 4>}, {pipeline_mode = #tpu.pipeline_mode<synchronous>, transform_indices = @transform_6, window_bounds = array<i64: 1, 4>}, {transform_indices = @transform_7, window_bounds = array<i64: 16, 4>}]} {
    %c0 = arith.constant 0 : index
    %c0_0 = arith.constant 0 : index
    %0 = vector.load %arg1[%c0, %c0_0] : memref<16x16xf32, #tpu.memory_space<vmem>>, vector<16x16xf32>
    %1 = arith.truncf %0 : vector<16x16xf32> to vector<16x16xbf16>
    %c0_1 = arith.constant 0 : index
    %c0_2 = arith.constant 0 : index
    %2 = vector.load %arg2[%c0_1, %c0_2] : memref<16x256xbf16, #tpu.memory_space<vmem>>, vector<16x256xbf16>
    %cst = arith.constant dense<0.000000e+00> : vector<16x256xf32>
    %3 = tpu.matmul %1, %2, %cst {dimension_numbers = #tpu.dot_dimension_numbers<[1], [0], [0], [1], [0, 0, 1, 1], [], []>} : vector<16x16xbf16>, vector<16x256xbf16>, vector<16x256xf32> -> vector<16x256xf32>
    %c0_3 = arith.constant 0 : index
    %c0_4 = arith.constant 0 : index
    %4 = vector.load %arg3[%c0_3, %c0_4] : memref<1x256xf32, #tpu.memory_space<vmem>>, vector<1x256xf32>
    %5 = vector.broadcast %4 : vector<1x256xf32> to vector<16x256xf32>
    %6 = arith.addf %3, %5 : vector<16x256xf32>
    %cst_5 = arith.constant 0.000000e+00 : f32
    %7 = vector.broadcast %cst_5 : f32 to vector<16x256xf32>
    %8 = arith.maximumf %6, %7 : vector<16x256xf32>
    %9 = arith.truncf %8 : vector<16x256xf32> to vector<16x256xbf16>
    %c0_6 = arith.constant 0 : index
    %c0_7 = arith.constant 0 : index
    %10 = vector.load %arg4[%c0_6, %c0_7] : memref<256x128xbf16, #tpu.memory_space<vmem>>, vector<256x128xbf16>
    %cst_8 = arith.constant dense<0.000000e+00> : vector<16x128xf32>
    %11 = tpu.matmul %9, %10, %cst_8 {dimension_numbers = #tpu.dot_dimension_numbers<[1], [0], [0], [1], [0, 0, 1, 1], [], []>} : vector<16x256xbf16>, vector<256x128xbf16>, vector<16x128xf32> -> vector<16x128xf32>
    %c0_9 = arith.constant 0 : index
    %c0_10 = arith.constant 0 : index
    %12 = vector.load %arg5[%c0_9, %c0_10] : memref<1x128xf32, #tpu.memory_space<vmem>>, vector<1x128xf32>
    %13 = vector.broadcast %12 : vector<1x128xf32> to vector<16x128xf32>
    %14 = arith.addf %11, %13 : vector<16x128xf32>
    %cst_11 = arith.constant 0.000000e+00 : f32
    %15 = vector.broadcast %cst_11 : f32 to vector<16x128xf32>
    %16 = arith.maximumf %14, %15 : vector<16x128xf32>
    %17 = arith.truncf %16 : vector<16x128xf32> to vector<16x128xbf16>
    %c0_12 = arith.constant 0 : index
    %c0_13 = arith.constant 0 : index
    %18 = vector.load %arg6[%c0_12, %c0_13] : memref<128x4xbf16, #tpu.memory_space<vmem>>, vector<128x4xbf16>
    %cst_14 = arith.constant dense<0.000000e+00> : vector<16x4xf32>
    %19 = tpu.matmul %17, %18, %cst_14 {dimension_numbers = #tpu.dot_dimension_numbers<[1], [0], [0], [1], [0, 0, 1, 1], [], []>} : vector<16x128xbf16>, vector<128x4xbf16>, vector<16x4xf32> -> vector<16x4xf32>
    %c0_15 = arith.constant 0 : index
    %c0_16 = arith.constant 0 : index
    %20 = vector.load %arg7[%c0_15, %c0_16] : memref<1x4xf32, #tpu.memory_space<vmem>>, vector<1x4xf32>
    %21 = vector.broadcast %20 : vector<1x4xf32> to vector<16x4xf32>
    %22 = arith.addf %19, %21 : vector<16x4xf32>
    %23 = math.tanh %22 : vector<16x4xf32>
    %cst_17 = arith.constant 2.000000e+00 : f32
    %24 = vector.broadcast %cst_17 : f32 to vector<16x4xf32>
    %25 = arith.mulf %23, %24 : vector<16x4xf32>
    %c0_18 = arith.constant 0 : index
    %c0_19 = arith.constant 0 : index
    %26 = vector.load %arg8[%c0_18, %c0_19] : memref<16x4xf32, #tpu.memory_space<vmem>>, vector<16x4xf32>
    tpu.vector_store %arg8[%c0_18, %c0_19], %25 {strides = array<i32>} : memref<16x4xf32, #tpu.memory_space<vmem>>, vector<16x4xf32>,
    return
  }
  func.func @transform_0(%arg0: i32) -> (i32, i32) {
    %c0_i32 = arith.constant 0 : i32
    %c0_i32_0 = arith.constant 0 : i32
    return %arg0, %c0_i32 : i32, i32
  }
  func.func @transform_1(%arg0: i32) -> (i32, i32) {
    %c0_i32 = arith.constant 0 : i32
    %c0_i32_0 = arith.constant 0 : i32
    %c0_i32_1 = arith.constant 0 : i32
    return %c0_i32, %c0_i32_0 : i32, i32
  }
  func.func @transform_2(%arg0: i32) -> (i32, i32) {
    %c0_i32 = arith.constant 0 : i32
    %c0_i32_0 = arith.constant 0 : i32
    %c0_i32_1 = arith.constant 0 : i32
    return %c0_i32, %c0_i32_0 : i32, i32
  }
  func.func @transform_3(%arg0: i32) -> (i32, i32) {
    %c0_i32 = arith.constant 0 : i32
    %c0_i32_0 = arith.constant 0 : i32
    %c0_i32_1 = arith.constant 0 : i32
    return %c0_i32, %c0_i32_0 : i32, i32
  }
  func.func @transform_4(%arg0: i32) -> (i32, i32) {
    %c0_i32 = arith.constant 0 : i32
    %c0_i32_0 = arith.constant 0 : i32
    %c0_i32_1 = arith.constant 0 : i32
    return %c0_i32, %c0_i32_0 : i32, i32
  }
  func.func @transform_5(%arg0: i32) -> (i32, i32) {
    %c0_i32 = arith.constant 0 : i32
    %c0_i32_0 = arith.constant 0 : i32
    %c0_i32_1 = arith.constant 0 : i32
    return %c0_i32, %c0_i32_0 : i32, i32
  }
  func.func @transform_6(%arg0: i32) -> (i32, i32) {
    %c0_i32 = arith.constant 0 : i32
    %c0_i32_0 = arith.constant 0 : i32
    %c0_i32_1 = arith.constant 0 : i32
    return %c0_i32, %c0_i32_0 : i32, i32
  }
  func.func @transform_7(%arg0: i32) -> (i32, i32) {
    %c0_i32 = arith.constant 0 : i32
    %c0_i32_0 = arith.constant 0 : i32
    return %arg0, %c0_i32 : i32, i32
  }
}

</mosaic_0001>

<llo_original>
// kernel: tpu_custom_call.1
$region0: #{tpu_custom_call.1}
  #allocation0 [shape = 'u32[]', space=smem, size = 0x4, offset = 0x4, fixed_abs, tag = 'smem constant byte address 0x4 - core index']
  #allocation1 [shape = 'u32[72,128]{1,0:T(1,128)}', space=vmem, size = 0x9000, scoped, tag = 'internal scratch']
  %s0 = inlined_call_operand.vmem [shape: f32[16,16], index: 0, kind: input, shape index: {}]
  %s1 = inlined_call_operand.vmem [shape: bf16[16,256], index: 1, kind: input, shape index: {}]
  %s2 = inlined_call_operand.vmem [shape: f32[1,256], index: 2, kind: input, shape index: {}]
  %s3 = inlined_call_operand.hbm [shape: bf16[256,128], index: 3, kind: input, shape index: {}]
  %s4 = inlined_call_operand.vmem [shape: f32[1,128], index: 4, kind: input, shape index: {}]
  %s5 = inlined_call_operand.vmem [shape: bf16[128,4], index: 5, kind: input, shape index: {}]
  %s6 = inlined_call_operand.vmem [shape: f32[1,4], index: 6, kind: input, shape index: {}]
  %s7 = inlined_call_operand.vmem [shape: f32[16,4], index: 7, kind: output, shape index: {}]
  %s8 = sld [smem:[#allocation0]]
  $region42: #{tpu_custom_call.1} parent=0
    _
  %s10 = ssub.s32 1, %s8
  %s11 = scalar_select 0, %s10, %s8
  $region1: #{tpu_custom_call.1} parent=0
    #allocation2 [shape = 'u8[65536]{0}', space=vmem, size = 0x10000, scoped, tag = 'input window, operand 3, single buffered']
    #allocation3 [shape = 's32[1]{0}', space=sflag, size = 0x4, scoped, tag = 'scoped memory for tpu_custom_call.1']
    %12 = vsyncpa [#allocation3], 0
    // Predicated region
    $region2: #{tpu_custom_call.1} parent=1 // pred_check
      _
    $region3: #{tpu_custom_call.1} parent=1 // pred_check_branch
      %14 = sbr.rel (0) target = $region5
    $region4: #{tpu_custom_call.1} parent=1 // pred_region
      _
    $region5: #{tpu_custom_call.1} parent=1 // pred_fallthru
      _
    // Predicated region
    $region6: #{tpu_custom_call.1} parent=1 // pred_check
      _
    $region7: #{tpu_custom_call.1} parent=1 // pred_check_branch
      %16 = sbr.rel (0) target = $region9
    $region8: #{tpu_custom_call.1} parent=1 // pred_region
      _
    $region9: #{tpu_custom_call.1} parent=1 // pred_fallthru
      _
    // Predicated region
    $region10: #{tpu_custom_call.1} parent=1 // pred_check
      _
    $region11: #{tpu_custom_call.1} parent=1 // pred_check_branch
      %18 = sbr.rel (0) target = $region13
    $region12: #{tpu_custom_call.1} parent=1 // pred_region
      _
    $region13: #{tpu_custom_call.1} parent=1 // pred_fallthru
      _
    // Predicated region
    $region14: #{tpu_custom_call.1} parent=1 // pred_check
      _
    $region15: #{tpu_custom_call.1} parent=1 // pred_check_branch
      %20 = sbr.rel (0) target = $region17
    $region16: #{tpu_custom_call.1} parent=1 // pred_region
      %22 = vsyncadd [#allocation3], 0
      %s23 = sshll.u32 %s3, 4
      %s24 = int_to_ptr.hbm [resolvable:$true] %s23
      %s25 = sshll.u32 [#allocation2], 4
      %s26 = int_to_ptr.vmem [resolvable:$true] %s25
      %31 = dma.hbm_to_vmem [thread:$0]  %s24, 2048, %s26, [#allocation3], 64, 64, 4
    $region17: #{tpu_custom_call.1} parent=1 // pred_fallthru
      _
    // Predicated region
    $region18: #{tpu_custom_call.1} parent=1 // pred_check
      _
    $region19: #{tpu_custom_call.1} parent=1 // pred_check_branch
      %33 = sbr.rel (0) target = $region21
    $region20: #{tpu_custom_call.1} parent=1 // pred_region
      _
    $region21: #{tpu_custom_call.1} parent=1 // pred_fallthru
      _
    // Predicated region
    $region22: #{tpu_custom_call.1} parent=1 // pred_check
      _
    $region23: #{tpu_custom_call.1} parent=1 // pred_check_branch
      %35 = sbr.rel (0) target = $region25
    $region24: #{tpu_custom_call.1} parent=1 // pred_region
      _
    $region25: #{tpu_custom_call.1} parent=1 // pred_fallthru
      _
    // Predicated region
    $region26: #{tpu_custom_call.1} parent=1 // pred_check
      _
    $region27: #{tpu_custom_call.1} parent=1 // pred_check_branch
      %37 = sbr.rel (0) target = $region29
    $region28: #{tpu_custom_call.1} parent=1 // pred_region
      _
    $region29: #{tpu_custom_call.1} parent=1 // pred_fallthru
      _
    // Predicated region
    $region30: #{tpu_custom_call.1} parent=1 // pred_check
      _
    $region31: #{tpu_custom_call.1} parent=1 // pred_check_branch
      %39 = sbr.rel (0) target = $region33
    $region32: #{tpu_custom_call.1} parent=1 // pred_region
      %41 = dma.done [#allocation3], 2048
    $region33: #{tpu_custom_call.1} parent=1 // pred_fallthru
      _
    %v43 = vld [vmem:[%s0] sm:$0xff]
    %v44 = vld [vmem:[%s0 + $0x8] sm:$0xff]
    %v45 = vpack.c.bf16 %v44, %v43
    %v46 = vld [vmem:[%s1] sm:$0xff]
    %v47 = vld [vmem:[%s1 + $0x8] sm:$0xff]
    %v48 = vld [vmem:[%s2] sm:$0x3]
    %v50 = vperm.slane %v48, 0
    %v51 = vperm.slane %v48, 1
    %v56 = vunpack.c.l.b16 %v46
    %v57 = vunpack.c.h.b16 %v46
    %v58 = vunpack.c.l.b16 %v47
    %v59 = vunpack.c.h.b16 %v47
    %v60 = vpack.c.b16 %v58, %v56
    %v61 = vpack.c.b16 %v59, %v57
    %vm64 = vcmask 130048
    %v66 = vsel %vm64, %v45, 0
    %68 = vmatpush.bf16.msra.mxu0 0
    %69 = vmatpush.bf16.msra.mxu0 0
    %70 = vmatpush.bf16.msra.mxu0 0
    %71 = vmatpush.bf16.msra.mxu0 0
    %72 = vmatpush.bf16.msra.mxu0 0
    %73 = vmatpush.bf16.msra.mxu0 0
    %74 = vmatpush.bf16.msra.mxu0 0
    %75 = vmatpush.bf16.msra.mxu0 %v60
    %76 = vmatmul.bf16.gmra.mxu0 %v66
    %v77 = vpop.f32.mrf.mxu0
    %v78 = vadd.f32 %v50, %v77
    %v79 = vpop.f32.mrf.mxu0
    %v80 = vadd.f32 %v50, %v79
    %81 = vdwg.mxu0
    %82 = vmatpush.bf16.msra.mxu0 0
    %83 = vmatpush.bf16.msra.mxu0 0
    %84 = vmatpush.bf16.msra.mxu0 0
    %85 = vmatpush.bf16.msra.mxu0 0
    %86 = vmatpush.bf16.msra.mxu0 0
    %87 = vmatpush.bf16.msra.mxu0 0
    %88 = vmatpush.bf16.msra.mxu0 0
    %89 = vmatpush.bf16.msra.mxu0 %v61
    %90 = vmatmul.bf16.gmra.mxu0 %v66
    %v91 = vpop.f32.mrf.mxu0
    %v92 = vadd.f32 %v51, %v91
    %v93 = vpop.f32.mrf.mxu0
    %v94 = vadd.f32 %v51, %v93
    %95 = vdwg.mxu0
    %v96 = vmax.f32 %v78, 0.0
    %v97 = vmax.f32 %v92, 0.0
    %v98 = vmax.f32 %v80, 0.0
    %v99 = vmax.f32 %v94, 0.0
    %v100 = vpack.c.bf16 %v98, %v96
    %v101 = vpack.c.bf16 %v99, %v97
    %v102 = vld [vmem:[#allocation2] sm:$0xf]
    %v103 = vld [vmem:[#allocation2 + $0x4] sm:$0xf]
    %v104 = vld [vmem:[#allocation2 + $0x8] sm:$0xf]
    %v105 = vld [vmem:[#allocation2 + $0xc] sm:$0xf]
    %v106 = vld [vmem:[#allocation2 + $0x10] sm:$0xf]
    %v107 = vld [vmem:[#allocation2 + $0x14] sm:$0xf]
    %v108 = vld [vmem:[#allocation2 + $0x18] sm:$0xf]
    %v109 = vld [vmem:[#allocation2 + $0x1c] sm:$0xf]
    %v110 = vld [vmem:[#allocation2 + $0x20] sm:$0xf]
    %v111 = vld [vmem:[#allocation2 + $0x24] sm:$0xf]
    %v112 = vld [vmem:[#allocation2 + $0x28] sm:$0xf]
    %v113 = vld [vmem:[#allocation2 + $0x2c] sm:$0xf]
    %v114 = vld [vmem:[#allocation2 + $0x30] sm:$0xf]
    %v115 = vld [vmem:[#allocation2 + $0x34] sm:$0xf]
    %v116 = vld [vmem:[#allocation2 + $0x38] sm:$0xf]
    %v117 = vld [vmem:[#allocation2 + $0x3c] sm:$0xf]
    %v118 = vld [vmem:[#allocation2 + $0x40] sm:$0xf]
    %v119 = vld [vmem:[#allocation2 + $0x44] sm:$0xf]
    %v120 = vld [vmem:[#allocation2 + $0x48] sm:$0xf]
    %v121 = vld [vmem:[#allocation2 + $0x4c] sm:$0xf]
    %v122 = vld [vmem:[#allocation2 + $0x50] sm:$0xf]
    %v123 = vld [vmem:[#allocation2 + $0x54] sm:$0xf]
    %v124 = vld [vmem:[#allocation2 + $0x58] sm:$0xf]
    %v125 = vld [vmem:[#allocation2 + $0x5c] sm:$0xf]
    %v126 = vld [vmem:[#allocation2 + $0x60] sm:$0xf]
    %v127 = vld [vmem:[#allocation2 + $0x64] sm:$0xf]
    %v128 = vld [vmem:[#allocation2 + $0x68] sm:$0xf]
    %v129 = vld [vmem:[#allocation2 + $0x6c] sm:$0xf]
    %v130 = vld [vmem:[#allocation2 + $0x70] sm:$0xf]
    %v131 = vld [vmem:[#allocation2 + $0x74] sm:$0xf]
    %v132 = vld [vmem:[#allocation2 + $0x78] sm:$0xf]
    %v133 = vld [vmem:[#allocation2 + $0x7c] sm:$0xf]
    %v134 = vld [vmem:[%s4] sm:$0x1]
    %v136 = vperm.slane %v134, 0
    %v170 = vunpack.c.l.b16 %v102
    %v171 = vunpack.c.l.b16 %v103
    %v172 = vunpack.c.l.b16 %v104
    %v173 = vunpack.c.l.b16 %v105
    %v174 = vunpack.c.l.b16 %v106
    %v175 = vunpack.c.l.b16 %v107
    %v176 = vunpack.c.l.b16 %v108
    %v177 = vunpack.c.l.b16 %v109
    %v178 = vunpack.c.l.b16 %v110
    %v179 = vunpack.c.l.b16 %v111
    %v180 = vunpack.c.l.b16 %v112
    %v181 = vunpack.c.l.b16 %v113
    %v182 = vunpack.c.l.b16 %v114
    %v183 = vunpack.c.l.b16 %v115
    %v184 = vunpack.c.l.b16 %v116
    %v185 = vunpack.c.l.b16 %v117
    %v186 = vunpack.c.l.b16 %v118
    %v187 = vunpack.c.l.b16 %v119
    %v188 = vunpack.c.l.b16 %v120
    %v189 = vunpack.c.l.b16 %v121
    %v190 = vunpack.c.l.b16 %v122
    %v191 = vunpack.c.l.b16 %v123
    %v192 = vunpack.c.l.b16 %v124
    %v193 = vunpack.c.l.b16 %v125
    %v194 = vunpack.c.l.b16 %v126
    %v195 = vunpack.c.l.b16 %v127
    %v196 = vunpack.c.l.b16 %v128
    %v197 = vunpack.c.l.b16 %v129
    %v198 = vunpack.c.l.b16 %v130
    %v199 = vunpack.c.l.b16 %v131
    %v200 = vunpack.c.l.b16 %v132
    %v201 = vunpack.c.l.b16 %v133
    %v202 = vpack.c.b16 %v171, %v170
    %v203 = vpack.c.b16 %v173, %v172
    %v204 = vpack.c.b16 %v175, %v174
    %v205 = vpack.c.b16 %v177, %v176
    %v206 = vpack.c.b16 %v179, %v178
    %v207 = vpack.c.b16 %v181, %v180
    %v208 = vpack.c.b16 %v183, %v182
    %v209 = vpack.c.b16 %v185, %v184
    %v210 = vpack.c.b16 %v187, %v186
    %v211 = vpack.c.b16 %v189, %v188
    %v212 = vpack.c.b16 %v191, %v190
    %v213 = vpack.c.b16 %v193, %v192
    %v214 = vpack.c.b16 %v195, %v194
    %v215 = vpack.c.b16 %v197, %v196
    %v216 = vpack.c.b16 %v199, %v198
    %v217 = vpack.c.b16 %v201, %v200
    %234 = vmatpush.bf16.msra.mxu0 %v209
    %235 = vmatpush.bf16.msra.mxu0 %v208
    %236 = vmatpush.bf16.msra.mxu0 %v207
    %237 = vmatpush.bf16.msra.mxu0 %v206
    %238 = vmatpush.bf16.msra.mxu0 %v205
    %239 = vmatpush.bf16.msra.mxu0 %v204
    %240 = vmatpush.bf16.msra.mxu0 %v203
    %241 = vmatpush.bf16.msra.mxu0 %v202
    %242 = vmatmul.bf16.gmra.mxu0 %v100
    %v243 = vpop.f32.mrf.mxu0
    %v244 = vadd.f32 %v136, %v243
    %v245 = vpop.f32.mrf.mxu0
    %v246 = vadd.f32 %v136, %v245
    %247 = vdwg.mxu0
    %248 = vmatpush.bf16.msra.mxu0 %v217
    %249 = vmatpush.bf16.msra.mxu0 %v216
    %250 = vmatpush.bf16.msra.mxu0 %v215
    %251 = vmatpush.bf16.msra.mxu0 %v214
    %252 = vmatpush.bf16.msra.mxu0 %v213
    %253 = vmatpush.bf16.msra.mxu0 %v212
    %254 = vmatpush.bf16.msra.mxu0 %v211
    %255 = vmatpush.bf16.msra.mxu0 %v210
    %256 = vmatmul.bf16.gmra.mxu0 %v101
    %v257 = vpop.f32.mrf.mxu0
    %v258 = vadd.f32 %v244, %v257
    %v259 = vpop.f32.mrf.mxu0
    %v260 = vadd.f32 %v246, %v259
    %261 = vdwg.mxu0
    %v262 = vmax.f32 %v258, 0.0
    %v263 = vmax.f32 %v260, 0.0
    %v264 = vpack.c.bf16 %v263, %v262
    %v265 = vld [vmem:[%s5] sm:$0xf]
    %v266 = vld [vmem:[%s5 + $0x4] sm:$0xf]
    %v267 = vld [vmem:[%s5 + $0x8] sm:$0xf]
    %v268 = vld [vmem:[%s5 + $0xc] sm:$0xf]
    %v269 = vld [vmem:[%s5 + $0x10] sm:$0xf]
    %v270 = vld [vmem:[%s5 + $0x14] sm:$0xf]
    %v271 = vld [vmem:[%s5 + $0x18] sm:$0xf]
    %v272 = vld [vmem:[%s5 + $0x1c] sm:$0xf]
    %v273 = vld [vmem:[%s5 + $0x20] sm:$0xf]
    %v274 = vld [vmem:[%s5 + $0x24] sm:$0xf]
    %v275 = vld [vmem:[%s5 + $0x28] sm:$0xf]
    %v276 = vld [vmem:[%s5 + $0x2c] sm:$0xf]
    %v277 = vld [vmem:[%s5 + $0x30] sm:$0xf]
    %v278 = vld [vmem:[%s5 + $0x34] sm:$0xf]
    %v279 = vld [vmem:[%s5 + $0x38] sm:$0xf]
    %v280 = vld [vmem:[%s5 + $0x3c] sm:$0xf]
    %v281 = vld [vmem:[%s6] sm:$0x1]
    %v283 = vperm.slane %v281, 0
    %v301 = vunpack.c.l.b16 %v265
    %v302 = vunpack.c.l.b16 %v266
    %v303 = vunpack.c.l.b16 %v267
    %v304 = vunpack.c.l.b16 %v268
    %v305 = vunpack.c.l.b16 %v269
    %v306 = vunpack.c.l.b16 %v270
    %v307 = vunpack.c.l.b16 %v271
    %v308 = vunpack.c.l.b16 %v272
    %v309 = vunpack.c.l.b16 %v273
    %v310 = vunpack.c.l.b16 %v274
    %v311 = vunpack.c.l.b16 %v275
    %v312 = vunpack.c.l.b16 %v276
    %v313 = vunpack.c.l.b16 %v277
    %v314 = vunpack.c.l.b16 %v278
    %v315 = vunpack.c.l.b16 %v279
    %v316 = vunpack.c.l.b16 %v280
    %v317 = vpack.c.b16 %v302, %v301
    %v318 = vpack.c.b16 %v304, %v303
    %v319 = vpack.c.b16 %v306, %v305
    %v320 = vpack.c.b16 %v308, %v307
    %v321 = vpack.c.b16 %v310, %v309
    %v322 = vpack.c.b16 %v312, %v311
    %v323 = vpack.c.b16 %v314, %v313
    %v324 = vpack.c.b16 %v316, %v315
    %333 = vmatpush.bf16.msra.mxu0 %v324
    %334 = vmatpush.bf16.msra.mxu0 %v323
    %335 = vmatpush.bf16.msra.mxu0 %v322
    %336 = vmatpush.bf16.msra.mxu0 %v321
    %337 = vmatpush.bf16.msra.mxu0 %v320
    %338 = vmatpush.bf16.msra.mxu0 %v319
    %339 = vmatpush.bf16.msra.mxu0 %v318
    %340 = vmatpush.bf16.msra.mxu0 %v317
    %341 = vmatmul.bf16.gmra.mxu0 %v264
    %v342 = vpop.f32.mrf.mxu0
    %v343 = vadd.f32 %v283, %v342
    %v344 = vpop.f32.mrf.mxu0
    %v345 = vadd.f32 %v283, %v344
    %346 = vdwg.mxu0
    %v347 = vtanh.pop %v343
    %v348 = vtanh.pop %v345
    %v349 = vmul.f32 %v347, 2.0
    %v350 = vmul.f32 %v348, 2.0
    %vm351 = vcmask 31744
    %352 = vst.msk [vmem:[%s7] sm:$0xff] %vm351, %v349
    %353 = vst.msk [vmem:[%s7 + $0x8] sm:$0xff] %vm351, %v350
    // Predicated region
    $region34: #{tpu_custom_call.1} parent=1 // pred_check
      _
    $region35: #{tpu_custom_call.1} parent=1 // pred_check_branch
      %355 = sbr.rel (0) target = $region37
    $region36: #{tpu_custom_call.1} parent=1 // pred_region
      _
    $region37: #{tpu_custom_call.1} parent=1 // pred_fallthru
      _
    // Predicated region
    $region38: #{tpu_custom_call.1} parent=1 // pred_check
      _
    $region39: #{tpu_custom_call.1} parent=1 // pred_check_branch
      %357 = sbr.rel (0) target = $region41
    $region40: #{tpu_custom_call.1} parent=1 // pred_region
      _
    $region41: #{tpu_custom_call.1} parent=1 // pred_fallthru
      _
    %358 = vsyncpa [#allocation3], 1

</llo_original>
